<compile_context>
chip_gen: v5e
topology: v5e:2x2
jax: 0.10.0
libtpu: 0.0.40
codegen_flags: <defaults>
</compile_context>

<pallas_src>
import functools

import numpy as np
import jax
import jax.numpy as jnp
from jax.experimental import pallas as pl
from jax.experimental.pallas import tpu as pltpu


_LANE_TILES = (512, 256, 128)                        # last-dim (lane) tile candidates
_SUBLANE_TILES = (512, 256, 128, 64, 32, 16, 8)      # second-to-last-dim tile candidates


# ---------------------------------------------------------------------------
# Hardware-aware VMEM budgets
# ---------------------------------------------------------------------------
@functools.lru_cache(maxsize=1)
def _vmem_budgets():
    """(workset_budget_bytes, vmem_limit_bytes) — generation aware."""
    cap = None
    try:
        cap = int(getattr(pltpu.get_tpu_info(), "vmem_capacity_bytes", 0)) or None
    except Exception:
        cap = None
    if cap is None:
        cap = 64 * 1024 * 1024                       # unknown -> assume v7x-sized VMEM
    if cap >= 100 * 1024 * 1024:                     # v5e / v6e: 128 MiB physical VMEM
        return 56 * 1024 * 1024, 96 * 1024 * 1024
    # v7x-class (64 MiB): keep scoped limit <= ~48 MiB, leave Mosaic headroom.
    return 28 * 1024 * 1024, 48 * 1024 * 1024


def _round_up(v, m):
    return ((v + m - 1) // m) * m


# ---------------------------------------------------------------------------
# Cosine basis (replaces the expkM/expkN twiddle tables of dct2_fft2)
# ---------------------------------------------------------------------------
# TODO(synk): openparf's dct2_fft2 realizes the transform with an rfft plus complex
# expkM/expkN twiddles; there is no clean Pallas FFT, so the mathematically
# equivalent dense cosine-basis (unnormalized DCT-II) matmul formulation is used —
# verify any constant scale factor folded into the expk tables against the C++ op.
@functools.lru_cache(maxsize=None)
def _dct_basis(L, Lp, dtype, transpose=False):
    """C[k, n] = cos(pi*(2n+1)*k/(2L)), zero-padded to (Lp, Lp). Cached per key."""
    n = np.arange(L)
    k = np.arange(L)
    c = np.cos(np.pi * np.outer(k, 2 * n + 1) / (2.0 * L))
    cp = np.zeros((Lp, Lp), dtype=np.float64)
    cp[:L, :L] = c
    if transpose:
        cp = cp.T
    return jnp.asarray(np.ascontiguousarray(cp), dtype=dtype)


# ---------------------------------------------------------------------------
# Fused kernel:  out_tile = (C_M[tile] @ x) @ C_N^T   (intermediate stays on chip)
# ---------------------------------------------------------------------------
def _dct2_fused_kernel(cm_ref, x_ref, cnt_ref, o_ref):
    # Stage 1: tmp = C_M[tile] @ x   -> (tm, Np), f32 accumulation on the MXU.
    tmp = jnp.dot(cm_ref[...], x_ref[...], preferred_element_type=jnp.float32)
    # Stage 2: out = tmp @ C_N^T     -> no HBM roundtrip of the intermediate.
    tmp = tmp.astype(cnt_ref.dtype)
    o_ref[...] = jnp.dot(tmp, cnt_ref[...],
                         preferred_element_type=jnp.float32).astype(o_ref.dtype)


def _fused_row_tile(Mp, Np, in_bytes, out_bytes, granule, budget):
    """Largest row tile whose (conservative, double-buffered) working set fits VMEM.

    Prefers a tile giving >= 2 grid steps along M so the v7x megacore has tiles to
    shard and cm/out DMAs overlap compute.  Returns None -> use two-stage fallback.
    """
    def workset(tm):
        return (2 * tm * Mp * in_bytes        # C_M tile (double-buffered)
                + 2 * Mp * Np * in_bytes      # x map
                + 2 * Np * Np * in_bytes      # C_N^T
                + 2 * tm * Np * out_bytes     # output tile
                + 2 * tm * Np * 4)            # live f32 intermediates

    cands = [t for t in _SUBLANE_TILES if t % granule == 0 and Mp % t == 0]
    if Mp % granule == 0 and Mp not in cands:
        cands.append(Mp)
    cands = sorted(set(cands), reverse=True)
    fitting = [t for t in cands if workset(t) <= budget]
    if not fitting:
        return None
    for t in fitting:                         # largest tile that still yields >= 2 steps
        if Mp // t >= 2:
            return t
    return fitting[-1]


def _dct2_fused(x3, cm, cnt, out_dtype, tm, vmem_limit):
    B, Mp, Np = x3.shape
    n_m = Mp // tm
    in_bytes = np.dtype(cm.dtype).itemsize
    out_dtype = np.dtype(out_dtype)

    cost = pl.CostEstimate(
        flops=int(2 * B * Mp * Np * (Mp + Np)),
        transcendentals=0,
        bytes_accessed=int(B * Mp * Mp * in_bytes          # C_M (re-fetched per map)
                           + B * Mp * Np * in_bytes        # x
                           + Np * Np * in_bytes            # C_N^T (resident)
                           + B * Mp * Np * out_dtype.itemsize),
    )

    return pl.pallas_call(
        _dct2_fused_kernel,
        out_shape=jax.ShapeDtypeStruct((B, Mp, Np), out_dtype),
        grid_spec=pltpu.PrefetchScalarGridSpec(
            num_scalar_prefetch=0,
            grid=(B, n_m),
            in_specs=[
                pl.BlockSpec((tm, Mp), lambda b, i: (i, 0)),                    # C_M tile
                pl.BlockSpec((pl.Squeezed(), Mp, Np), lambda b, i: (b, 0, 0)),  # x map
                pl.BlockSpec((Np, Np), lambda b, i: (0, 0)),                    # C_N^T
            ],
            out_specs=pl.BlockSpec((pl.Squeezed(), tm, Np), lambda b, i: (b, i, 0)),
        ),
        compiler_params=pltpu.CompilerParams(
            dimension_semantics=("parallel", "parallel"),
            vmem_limit_bytes=vmem_limit,
        ),
        cost_estimate=cost,
    )(cm, x3, cnt)


# ---------------------------------------------------------------------------
# Two-stage fallback: canonical tiled matmuls (only for maps too large for VMEM)
# ---------------------------------------------------------------------------
def _pick_tile(dim, candidates):
    for t in candidates:
        if dim % t == 0:
            return t
    return dim  # full (untiled) extent — legal for the last two block dims


def _shrink_for_vmem(tm, tn, tk, in_bytes, out_bytes, min_tm, budget):
    """Shrink tiles until the double-buffered working set fits the VMEM budget."""

    def workset(tm_, tn_, tk_):
        return (2 * (tm_ * tk_ + tk_ * tn_) * in_bytes    # double-buffered inputs
                + 2 * tm_ * tn_ * out_bytes               # double-buffered output tile
                + tm_ * tn_ * 4)                          # f32 accumulator scratch

    while workset(tm, tn, tk) > budget:
        if tk % 256 == 0:                    # halve reduction tile first (stays 128-mult)
            tk //= 2
        elif tm % (2 * min_tm) == 0:         # then sublane tile (never below granule)
            tm //= 2
        elif tn % 256 == 0:                  # keep output lane dim large (dense vst)
            tn //= 2
        else:
            break
    assert workset(tm, tn, tk) <= budget, (
        f"VMEM tile shrink dead-ended above budget: tm={tm} tn={tn} tk={tk}")
    return tm, tn, tk


def _bmm_acc_kernel(a_ref, b_ref, o_ref, acc_ref):
    """One (tm, tn) output tile; accumulate over the K grid axis (last, 'arbitrary')."""

    @pl.when(pl.program_id(3) == 0)
    def _init():
        acc_ref[...] = jnp.zeros_like(acc_ref)

    acc_ref[...] += jnp.dot(a_ref[...], b_ref[...],
                            preferred_element_type=jnp.float32)

    @pl.when(pl.program_id(3) == pl.num_programs(3) - 1)
    def _finalize():
        o_ref[...] = acc_ref[...].astype(o_ref.dtype)


def _bmm(a, b, *, out_dtype, min_tm, budget, vmem_limit):
    """out[p] = A @ B (tiled MXU matmul).  At most one operand carries a batch dim."""
    a_batched = a.ndim == 3
    b_batched = b.ndim == 3
    if not a_batched and not b_batched:
        a = a[None]
        a_batched = True
    Bsz = a.shape[0] if a_batched else b.shape[0]
    M, K = a.shape[-2], a.shape[-1]
    assert b.shape[-2] == K
    N = b.shape[-1]
    out_dtype = np.dtype(out_dtype)

    sub_cands = tuple(t for t in _SUBLANE_TILES if t % min_tm == 0)
    tm = _pick_tile(M, sub_cands)
    tn = _pick_tile(N, _LANE_TILES)
    tk = _pick_tile(K, _LANE_TILES)
    in_bytes = max(np.dtype(a.dtype).itemsize, np.dtype(b.dtype).itemsize)
    tm, tn, tk = _shrink_for_vmem(tm, tn, tk, in_bytes, out_dtype.itemsize,
                                  min_tm, budget)

    n_i, n_j, n_k = M // tm, N // tn, K // tk
    grid = (Bsz, n_i, n_j, n_k)

    if a_batched:
        a_spec = pl.BlockSpec((pl.Squeezed(), tm, tk), lambda p, i, j, k: (p, i, k))
    else:
        a_spec = pl.BlockSpec((tm, tk), lambda p, i, j, k: (i, k))
    if b_batched:
        b_spec = pl.BlockSpec((pl.Squeezed(), tk, tn), lambda p, i, j, k: (p, k, j))
    else:
        b_spec = pl.BlockSpec((tk, tn), lambda p, i, j, k: (k, j))
    o_spec = pl.BlockSpec((pl.Squeezed(), tm, tn), lambda p, i, j, k: (p, i, j))

    # Re-fetch across output tiles accounted for: A per N-tile, B per M-tile.
    cost = pl.CostEstimate(
        flops=int(2 * Bsz * M * N * K),
        transcendentals=0,
        bytes_accessed=int(Bsz * M * K * n_j * np.dtype(a.dtype).itemsize
                           + Bsz * K * N * n_i * np.dtype(b.dtype).itemsize
                           + Bsz * M * N * out_dtype.itemsize),
    )

    return pl.pallas_call(
        _bmm_acc_kernel,
        out_shape=jax.ShapeDtypeStruct((Bsz, M, N), out_dtype),
        grid_spec=pltpu.PrefetchScalarGridSpec(
            num_scalar_prefetch=0,
            grid=grid,
            in_specs=[a_spec, b_spec],
            out_specs=o_spec,
            scratch_shapes=[pltpu.VMEM((tm, tn), jnp.float32)],
        ),
        compiler_params=pltpu.CompilerParams(
            dimension_semantics=("parallel", "parallel", "parallel", "arbitrary"),
            vmem_limit_bytes=vmem_limit,
        ),
        cost_estimate=cost,
    )(a, b)


def _dct2_two_stage(x3, cm, cnt, out_dtype, granule, budget, vmem_limit):
    B, Mp, Np = x3.shape
    # Stage A (shared-RHS first, batch flattened into rows): Y = X_flat @ C_N^T.
    # Large row tile + stationary C_N^T across the whole batch.
    y = _bmm(x3.reshape(1, B * Mp, Np), cnt, out_dtype=x3.dtype,
             min_tm=granule, budget=budget, vmem_limit=vmem_limit)
    y = y.reshape(B, Mp, Np)
    # Stage B (shared-LHS, per map): out[b] = C_M @ y[b].
    # Note: y is stored in the compute dtype (one extra rounding when bf16); the
    # fused path avoids this by keeping the intermediate in f32 on chip.
    return _bmm(cm, y, out_dtype=out_dtype,
                min_tm=granule, budget=budget, vmem_limit=vmem_limit)


# ---------------------------------------------------------------------------
# Public entry point (matches Dct2.forward semantics)
# ---------------------------------------------------------------------------
def dct2(x, compute_dtype=None, *, _force_two_stage=False):
    """Unnormalized 2-D DCT-II over the last two dims of x; matches Dct2 forward.

    compute_dtype=None (default) runs the MXU matmuls with bf16 operands and f32
    accumulation (output keeps x.dtype); pass jnp.float32 for full precision.
    """
    M, N = x.shape[-2], x.shape[-1]
    out_dtype = x.dtype
    cdt = np.dtype(jnp.bfloat16) if compute_dtype is None else np.dtype(compute_dtype)
    granule = 16 if cdt.itemsize < 4 else 8          # sublane packing granule
    Mp = _round_up(M, granule)
    Np = _round_up(N, 128)

    workset_budget, vmem_limit = _vmem_budgets()

    cm = _dct_basis(M, Mp, cdt)                      # (Mp, Mp)  C_M, zero padded
    cnt = _dct_basis(N, Np, cdt, transpose=True)     # (Np, Np)  C_N^T, zero padded

    x3 = x.reshape((-1, M, N)).astype(cdt)
    if (Mp != M) or (Np != N):
        x3 = jnp.pad(x3, ((0, 0), (0, Mp - M), (0, Np - N)))

    tm = None if _force_two_stage else _fused_row_tile(
        Mp, Np, cdt.itemsize, np.dtype(out_dtype).itemsize, granule, workset_budget)

    if tm is not None:
        out = _dct2_fused(x3, cm, cnt, out_dtype, tm, vmem_limit)
    else:
        out = _dct2_two_stage(x3, cm, cnt, out_dtype, granule,
                              workset_budget, vmem_limit)

    out = out[..., :M, :N]
    return out.reshape(x.shape)


if __name__ == "__main__":
    def dct2_ref(xnp):
        Mr, Nr = xnp.shape[-2], xnp.shape[-1]
        cmr = np.cos(np.pi * np.outer(np.arange(Mr), 2 * np.arange(Mr) + 1) / (2.0 * Mr))
        cnr = np.cos(np.pi * np.outer(np.arange(Nr), 2 * np.arange(Nr) + 1) / (2.0 * Nr))
        return np.einsum("um,...mn,vn->...uv", cmr, np.asarray(xnp, np.float64), cnr)

    # 1) Single map (module's forward signature), explicit f32 compute path.
    M, N = 32, 128
    x = jax.random.normal(jax.random.PRNGKey(0), (M, N), dtype=jnp.float32)
    out = jax.block_until_ready(dct2(x, compute_dtype=jnp.float32))
    ref = dct2_ref(x)
    assert out.shape == (M, N) and out.dtype == x.dtype
    np.testing.assert_allclose(np.asarray(out), ref, rtol=1e-4, atol=1e-3)

    # 2) Batched maps, default bf16-operand / f32-accumulate fused path.
    xb = jax.random.normal(jax.random.PRNGKey(1), (4, M, N), dtype=jnp.float32)
    outb = jax.block_until_ready(dct2(xb))
    refb = dct2_ref(xb)
    rel = np.linalg.norm(np.asarray(outb, np.float64) - refb) / np.linalg.norm(refb)
    assert outb.shape == xb.shape and outb.dtype == xb.dtype
    assert rel < 3e-2, f"bf16 relative error too large: {rel}"

    # 3) Non-(8,128)-divisible map (exercises the zero-pad + slice path), f32.
    xo = jax.random.normal(jax.random.PRNGKey(2), (20, 100), dtype=jnp.float32)
    outo = jax.block_until_ready(dct2(xo, compute_dtype=jnp.float32))
    np.testing.assert_allclose(np.asarray(outo), dct2_ref(xo), rtol=1e-4, atol=1e-3)

    # 4) Two-stage fallback path (used when a map is too large to stay VMEM-resident).
    out2 = jax.block_until_ready(dct2(x, compute_dtype=jnp.float32,
                                      _force_two_stage=True))
    np.testing.assert_allclose(np.asarray(out2), ref, rtol=1e-4, atol=1e-3)

    print("KERNEL_OK")
</pallas_src>

<mosaic_0001>
module attributes {stable_mosaic.version = 11 : i64} {
  func.func @_dct2_fused_kernel(%arg0: i32, %arg1: i32, %arg2: memref<16x32xf32, #tpu.memory_space<vmem>>, %arg3: memref<1x32x128xf32, #tpu.memory_space<vmem>>, %arg4: memref<128x128xf32, #tpu.memory_space<vmem>>, %arg5: memref<1x16x128xf32, #tpu.memory_space<vmem>>) attributes {dimension_semantics = [#tpu.dimension_semantics<parallel>, #tpu.dimension_semantics<parallel>], iteration_bounds = array<i64: 1, 2>, scalar_prefetch = 0 : i64, scratch_operands = 0 : i64, tpu.core_type = #tpu.core_type<tc>, window_params = [{transform_indices = @transform_0, window_bounds = array<i64: 16, 32>}, {transform_indices = @transform_1, window_bounds = array<i64: 1, 32, 128>}, {pipeline_mode = #tpu.pipeline_mode<synchronous>, transform_indices = @transform_2, window_bounds = array<i64: 128, 128>}, {transform_indices = @transform_3, window_bounds = array<i64: 1, 16, 128>}]} {
    %c0 = arith.constant 0 : index
    %c0_0 = arith.constant 0 : index
    %0 = vector.load %arg2[%c0, %c0_0] : memref<16x32xf32, #tpu.memory_space<vmem>>, vector<16x32xf32>
    %c0_1 = arith.constant 0 : index
    %c0_2 = arith.constant 0 : index
    %c0_3 = arith.constant 0 : index
    %1 = vector.load %arg3[%c0_1, %c0_2, %c0_3] : memref<1x32x128xf32, #tpu.memory_space<vmem>>, vector<1x32x128xf32>
    %2 = vector.shape_cast %1 : vector<1x32x128xf32> to vector<32x128xf32>
    %cst = arith.constant dense<0.000000e+00> : vector<16x128xf32>
    %3 = tpu.matmul %0, %2, %cst {dimension_numbers = #tpu.dot_dimension_numbers<[1], [0], [0], [1], [0, 0, 1, 1], [], []>} : vector<16x32xf32>, vector<32x128xf32>, vector<16x128xf32> -> vector<16x128xf32>
    %c0_4 = arith.constant 0 : index
    %c0_5 = arith.constant 0 : index
    %4 = vector.load %arg4[%c0_4, %c0_5] : memref<128x128xf32, #tpu.memory_space<vmem>>, vector<128x128xf32>
    %cst_6 = arith.constant dense<0.000000e+00> : vector<16x128xf32>
    %5 = tpu.matmul %3, %4, %cst_6 {dimension_numbers = #tpu.dot_dimension_numbers<[1], [0], [0], [1], [0, 0, 1, 1], [], []>} : vector<16x128xf32>, vector<128x128xf32>, vector<16x128xf32> -> vector<16x128xf32>
    %c0_7 = arith.constant 0 : index
    %c0_8 = arith.constant 0 : index
    %c0_9 = arith.constant 0 : index
    %6 = vector.load %arg5[%c0_7, %c0_8, %c0_9] : memref<1x16x128xf32, #tpu.memory_space<vmem>>, vector<1x16x128xf32>
    %7 = vector.shape_cast %6 : vector<1x16x128xf32> to vector<16x128xf32>
    %8 = vector.shape_cast %5 : vector<16x128xf32> to vector<1x16x128xf32>
    tpu.vector_store %arg5[%c0_7, %c0_8, %c0_9], %8 {strides = array<i32>} : memref<1x16x128xf32, #tpu.memory_space<vmem>>, vector<1x16x128xf32>,
    return
  }
  func.func @transform_0(%arg0: i32, %arg1: i32) -> (i32, i32) {
    %c0_i32 = arith.constant 0 : i32
    %c0_i32_0 = arith.constant 0 : i32
    return %arg1, %c0_i32 : i32, i32
  }
  func.func @transform_1(%arg0: i32, %arg1: i32) -> (i32, i32, i32) {
    %c0_i32 = arith.constant 0 : i32
    %c0_i32_0 = arith.constant 0 : i32
    %c0_i32_1 = arith.constant 0 : i32
    return %arg0, %c0_i32, %c0_i32_0 : i32, i32, i32
  }
  func.func @transform_2(%arg0: i32, %arg1: i32) -> (i32, i32) {
    %c0_i32 = arith.constant 0 : i32
    %c0_i32_0 = arith.constant 0 : i32
    %c0_i32_1 = arith.constant 0 : i32
    return %c0_i32, %c0_i32_0 : i32, i32
  }
  func.func @transform_3(%arg0: i32, %arg1: i32) -> (i32, i32, i32) {
    %c0_i32 = arith.constant 0 : i32
    %c0_i32_0 = arith.constant 0 : i32
    return %arg0, %arg1, %c0_i32 : i32, i32, i32
  }
}

</mosaic_0001>

<llo_original>
// kernel: tpu_custom_call.1
$region0: #{tpu_custom_call.1}
  #allocation0 [shape = 'u32[]', space=smem, size = 0x4, offset = 0x4, fixed_abs, tag = 'smem constant byte address 0x4 - core index']
  #allocation1 [shape = 'u32[72,128]{1,0:T(1,128)}', space=vmem, size = 0x9000, scoped, tag = 'internal scratch']
  %s0 = inlined_call_operand.hbm [shape: f32[32,32], index: 0, kind: input, shape index: {}]
  %s1 = inlined_call_operand.hbm [shape: f32[1,32,128], index: 1, kind: input, shape index: {}]
  %s2 = inlined_call_operand.hbm [shape: f32[128,128], index: 2, kind: input, shape index: {}]
  %s3 = inlined_call_operand.hbm [shape: f32[1,32,128], index: 3, kind: output, shape index: {}]
  %s4 = sld [smem:[#allocation0]]
  $region57: #{tpu_custom_call.1} parent=0
    _
  %s6 = ssub.s32 1, %s4
  %s7 = scalar_select 0, %s6, %s4
  $region1: #{tpu_custom_call.1} parent=0
    #allocation2 [shape = 'u8[16384]{0}', space=vmem, size = 0x4000, scoped, tag = 'input window, operand 0']
    #allocation3 [shape = 's32[2]{0}', space=sflag, size = 0x8, scoped, tag = 'scoped memory for tpu_custom_call.1']
    #allocation4 [shape = 's32[2]{0}', space=sflag, size = 0x8, scoped, tag = 'scoped memory for tpu_custom_call.1']
    #allocation5 [shape = 'u8[16384]{0}', space=vmem, size = 0x4000, scoped, tag = 'input window, operand 1, single buffered']
    #allocation6 [shape = 's32[1]{0}', space=sflag, size = 0x4, scoped, tag = 'scoped memory for tpu_custom_call.1']
    #allocation7 [shape = 'u8[65536]{0}', space=vmem, size = 0x10000, scoped, tag = 'input window, operand 2, single buffered']
    #allocation8 [shape = 'u8[16384]{0}', space=vmem, size = 0x4000, scoped, tag = 'output window, operand 0']
    %8 = vsyncpa [#allocation3], 0
    %s9 = scalar_lea.sflag [#allocation3], 1
    %10 = vsyncpa %s9, 0
    %11 = vsyncpa [#allocation6], 0
    %12 = vsyncpa [#allocation4], 0
    %s13 = scalar_lea.sflag [#allocation4], 1
    %14 = vsyncpa %s13, 0
    loop: start=0, step=1, limit=4
    $region2: #{tpu_custom_call.1} parent=1 // loop_pre_header
      _
    $region3: #{tpu_custom_call.1} parent=1 // loop_header
      %s16 = sphi 0, %s20
      %p17 = scmp.ge.s32.totalorder %s16, 4
      %s23 = sphi 0, %s35
      %s24 = sphi 0, %s31
      %s25 = sphi 0, %s23
      %s26 = sphi 0, %s24
      %s27 = sphi 0, %s25
      %s28 = sphi 0, %s26
      %s38 = sphi 0, %s40
      %s41 = sphi 0, %s38
      %s42 = sphi 0, %s41
      %s58 = sphi 0, %s42
      %s64 = sphi 0, %s66
      %s67 = sphi 0, %s64
      %s68 = sphi 0, %s67
      %s84 = sphi 0, %s68
      %s88 = sphi 0, %s88
      %s90 = sphi 0, %s88
      %s91 = sphi 0, %s90
      %s105 = sphi 0, %s91
      %s113 = sphi 0, %s115
      %s116 = sphi 0, %s113
      %s117 = sphi 0, %s116
      %s133 = sphi 0, %s117
    $region4: #{tpu_custom_call.1} parent=1 // loop_header_branch
      %19 = sbr.rel (%p17) target = $region8
    $region5: #{tpu_custom_call.1} parent=1 // loop_body
      %s21 = ssub.s32 %s16, 1
      %s22 = ssub.s32 %s16, 2
      %s29 = sadd.s32 1, %s24
      %p30 = scmp.ge.s32.totalorder %s29, 2
      %s31 = scalar_select %p30, 0, %s29
      %s32 = sadd.s32 1, %s23
      %s33 = scalar_select %p30, %s32, %s23
      %p34 = scmp.ge.s32.totalorder %s33, 1
      %s35 = scalar_select %p34, 0, %s33
      %s36 = ssub.s32 %s24, %s31
      %p37 = scmp.eq.s32.totalorder %s36, 0
      %s39 = sadd.s32 %s38, 1
      %s40 = scalar_select %p37, %s38, %s39
      %p43 = pneg %p37
      %p44 = scmp.eq.s32.totalorder %s16, 1
      %p45 = por %p43, %p44
      %p46 = scmp.ne.s32.totalorder %s38, %s41
      %p47 = scmp.eq.s32.totalorder %s16, 0
      %p48 = por %p46, %p47
      %p49 = scmp.ne.s32.totalorder %s38, %s41
      %p50 = scmp.eq.s32.totalorder %s21, 1
      %p51 = por %p49, %p50
      %p52 = scmp.ne.s32.totalorder %s41, %s42
      %p53 = scmp.eq.s32.totalorder %s21, 0
      %p54 = por %p52, %p53
      %p55 = scmp.ne.s32.totalorder %s41, %s42
      %p56 = scmp.eq.s32.totalorder %s22, 1
      %p57 = por %p55, %p56
      %p59 = scmp.ne.s32.totalorder %s42, %s58
      %p60 = scmp.eq.s32.totalorder %s22, 0
      %p61 = por %p59, %p60
      %s62 = ssub.s32 %s23, %s35
      %p63 = scmp.eq.s32.totalorder %s62, 0
      %s65 = sadd.s32 %s64, 1
      %s66 = scalar_select %p63, %s64, %s65
      %p69 = pneg %p63
      %p70 = scmp.eq.s32.totalorder %s16, 1
      %p71 = por %p69, %p70
      %p72 = scmp.ne.s32.totalorder %s64, %s67
      %p73 = scmp.eq.s32.totalorder %s16, 0
      %p74 = por %p72, %p73
      %p75 = scmp.ne.s32.totalorder %s64, %s67
      %p76 = scmp.eq.s32.totalorder %s21, 1
      %p77 = por %p75, %p76
      %p78 = scmp.ne.s32.totalorder %s67, %s68
      %p79 = scmp.eq.s32.totalorder %s21, 0
      %p80 = por %p78, %p79
      %p81 = scmp.ne.s32.totalorder %s67, %s68
      %p82 = scmp.eq.s32.totalorder %s22, 1
      %p83 = por %p81, %p82
      %p85 = scmp.ne.s32.totalorder %s68, %s84
      %p86 = scmp.eq.s32.totalorder %s22, 0
      %p87 = por %p85, %p86
      %s89 = sadd.s32 %s88, 1
      %p92 = scmp.eq.s32.totalorder %s16, 1
      %p93 = scmp.ne.s32.totalorder %s88, %s90
      %p94 = scmp.eq.s32.totalorder %s16, 0
      %p95 = por %p93, %p94
      %p96 = scmp.ne.s32.totalorder %s88, %s90
      %p97 = scmp.eq.s32.totalorder %s21, 1
      %p98 = por %p96, %p97
      %p99 = scmp.ne.s32.totalorder %s90, %s91
      %p100 = scmp.eq.s32.totalorder %s21, 0
      %p101 = por %p99, %p100
      %p102 = scmp.ne.s32.totalorder %s90, %s91
      %p103 = scmp.eq.s32.totalorder %s22, 1
      %p104 = por %p102, %p103
      %p106 = scmp.ne.s32.totalorder %s91, %s105
      %p107 = scmp.eq.s32.totalorder %s22, 0
      %p108 = por %p106, %p107
      %s109 = ssub.s32 %s23, %s35
      %s110 = ssub.s32 %s24, %s31
      %s111 = sor.u32 %s109, %s110
      %p112 = scmp.eq.s32.totalorder %s111, 0
      %s114 = sadd.s32 %s113, 1
      %s115 = scalar_select %p112, %s113, %s114
      %p118 = pneg %p112
      %p119 = scmp.eq.s32.totalorder %s16, 1
      %p120 = por %p118, %p119
      %p121 = scmp.ne.s32.totalorder %s113, %s116
      %p122 = scmp.eq.s32.totalorder %s16, 0
      %p123 = por %p121, %p122
      %p124 = scmp.ne.s32.totalorder %s113, %s116
      %p125 = scmp.eq.s32.totalorder %s21, 1
      %p126 = por %p124, %p125
      %p127 = scmp.ne.s32.totalorder %s116, %s117
      %p128 = scmp.eq.s32.totalorder %s21, 0
      %p129 = por %p127, %p128
      %p130 = scmp.ne.s32.totalorder %s116, %s117
      %p131 = scmp.eq.s32.totalorder %s22, 1
      %p132 = por %p130, %p131
      %p134 = scmp.ne.s32.totalorder %s117, %s133
      %p135 = scmp.eq.s32.totalorder %s22, 0
      %p136 = por %p134, %p135
      %p137 = scmp.le.s32.totalorder 1, %s16
      %p138 = scmp.lt.s32.totalorder %s16, 3
      %p139 = pnand %p137, %p138
      %p140 = pneg %p139
      // Predicated region
      $region9: #{tpu_custom_call.1} parent=5 // pred_check
        _
      $region10: #{tpu_custom_call.1} parent=5 // pred_check_branch
        %142 = sbr.rel (%p139) target = $region12
      $region11: #{tpu_custom_call.1} parent=5 // pred_region
        %s143 = ssub.s32 %s16, 1
        // Predicated region
        $region13: #{tpu_custom_call.1} parent=11 // pred_check
          %p144 = pneg %p80
        $region14: #{tpu_custom_call.1} parent=11 // pred_check_branch
          %146 = sbr.rel (%p144) target = $region16
        $region15: #{tpu_custom_call.1} parent=11 // pred_region
          %148 = vsyncadd [#allocation6], 0
          %s149 = smul.addr %s25, 4
          %s150 = smul.addr %s149, 8
          %s151 = scalar_lea.hbm %s1, %s150
          %s152 = sshll.u32 %s151, 4
          %s153 = int_to_ptr.hbm [resolvable:$true] %s152
          %s154 = sshll.u32 [#allocation5], 4
          %s155 = int_to_ptr.vmem [resolvable:$true] %s154
          %160 = dma.hbm_to_vmem [thread:$0]  %s153, 512, %s155, [#allocation6], 128, 128, 8
        $region16: #{tpu_custom_call.1} parent=11 // pred_fallthru
          _
        // Predicated region
        $region17: #{tpu_custom_call.1} parent=11 // pred_check
          %p161 = pneg %p101
        $region18: #{tpu_custom_call.1} parent=11 // pred_check_branch
          %163 = sbr.rel (%p161) target = $region20
        $region19: #{tpu_custom_call.1} parent=11 // pred_region
          %165 = vsyncadd [#allocation6], 0
          %s166 = sshll.u32 %s2, 4
          %s167 = int_to_ptr.hbm [resolvable:$true] %s166
          %s168 = sshll.u32 [#allocation7], 4
          %s169 = int_to_ptr.vmem [resolvable:$true] %s168
          %174 = dma.hbm_to_vmem [thread:$0]  %s167, 2048, %s169, [#allocation6], 128, 128, 8
        $region20: #{tpu_custom_call.1} parent=11 // pred_fallthru
          _
      $region12: #{tpu_custom_call.1} parent=5 // pred_fallthru
        _
      %p175 = scmp.lt.s32.totalorder %s16, 2
      // Predicated region
      $region21: #{tpu_custom_call.1} parent=5 // pred_check
        %p176 = pneg %p175
      $region22: #{tpu_custom_call.1} parent=5 // pred_check_branch
        %178 = sbr.rel (%p176) target = $region24
      $region23: #{tpu_custom_call.1} parent=5 // pred_region
        // Predicated region
        $region25: #{tpu_custom_call.1} parent=23 // pred_check
          %p179 = pneg %p48
        $region26: #{tpu_custom_call.1} parent=23 // pred_check_branch
          %181 = sbr.rel (%p179) target = $region28
        $region27: #{tpu_custom_call.1} parent=23 // pred_region
          %s182 = sand.u32 %s38, 1
          %s183 = scalar_lea.sflag [#allocation3], %s182
          %s184 = sand.u32 %s38, 1
          %s185 = smul.addr %s184, 16
          %s186 = scalar_lea.vmem [#allocation2], %s185
          %s187 = smul.u32 2, %s24
          %189 = vsyncadd %s183, 0
          %s190 = smul.addr %s187, 8
          %s191 = scalar_lea.hbm %s0, %s190
          %s192 = sshll.u32 %s191, 4
          %s193 = int_to_ptr.hbm [resolvable:$true] %s192
          %s194 = sshll.u32 %s186, 4
          %s195 = int_to_ptr.vmem [resolvable:$true] %s194
          %200 = dma.hbm_to_vmem [thread:$0]  %s193, 256, %s195, %s183, 128, 128, 8
        $region28: #{tpu_custom_call.1} parent=23 // pred_fallthru
          _
      $region24: #{tpu_custom_call.1} parent=5 // pred_fallthru
        _
      %p201 = scmp.le.s32.totalorder 1, %s16
      %p202 = scmp.lt.s32.totalorder %s16, 3
      %p203 = pnand %p201, %p202
      %p204 = pneg %p203
      // Predicated region
      $region29: #{tpu_custom_call.1} parent=5 // pred_check
        _
      $region30: #{tpu_custom_call.1} parent=5 // pred_check_branch
        %206 = sbr.rel (%p203) target = $region32
      $region31: #{tpu_custom_call.1} parent=5 // pred_region
        %s207 = ssub.s32 %s16, 1
        %s208 = sand.u32 %s41, 1
        %s209 = scalar_lea.sflag [#allocation3], %s208
        %s210 = sand.u32 %s41, 1
        %s211 = smul.addr %s210, 16
        %s212 = scalar_lea.vmem [#allocation2], %s211
        // Predicated region
        $region33: #{tpu_custom_call.1} parent=31 // pred_check
          %p213 = pneg %p54
        $region34: #{tpu_custom_call.1} parent=31 // pred_check_branch
          %215 = sbr.rel (%p213) target = $region36
        $region35: #{tpu_custom_call.1} parent=31 // pred_region
          %217 = dma.done %s209, 256
        $region36: #{tpu_custom_call.1} parent=31 // pred_fallthru
          _
        // Predicated region
        $region37: #{tpu_custom_call.1} parent=31 // pred_check
          %p218 = pneg %p80
        $region38: #{tpu_custom_call.1} parent=31 // pred_check_branch
          %220 = sbr.rel (%p218) target = $region40
        $region39: #{tpu_custom_call.1} parent=31 // pred_region
          %222 = dma.done [#allocation6], 512
        $region40: #{tpu_custom_call.1} parent=31 // pred_fallthru
          _
        // Predicated region
        $region41: #{tpu_custom_call.1} parent=31 // pred_check
          %p223 = pneg %p101
        $region42: #{tpu_custom_call.1} parent=31 // pred_check_branch
          %225 = sbr.rel (%p223) target = $region44
        $region43: #{tpu_custom_call.1} parent=31 // pred_region
          %227 = dma.done [#allocation6], 2048
        $region44: #{tpu_custom_call.1} parent=31 // pred_fallthru
          _
        %s228 = sand.u32 %s41, 1
        %s229 = scalar_lea.sflag [#allocation3], %s228
        %s230 = sand.u32 %s41, 1
        %s231 = smul.addr %s230, 16
        %s232 = scalar_lea.vmem [#allocation2], %s231
        %p233 = pneg %p54
        %p234 = pneg %p51
        %p235 = pneg %p80
        %p236 = pneg %p77
        %p237 = pneg %p101
        %p238 = pneg %p98
        %p239 = pneg %p129
        %p240 = pneg %p126
        %s241 = sand.u32 %s116, 1
        %s242 = scalar_lea.sflag [#allocation4], %s241
        %s243 = sand.u32 %s116, 1
        %s244 = smul.addr %s243, 16
        %s245 = scalar_lea.vmem [#allocation8], %s244
        %s246 = smul.u32 2, %s26
        %s247 = smul.u32 2, %s26
        %v248 = vld [vmem:[%s212] sm:$0xff]
        %v249 = vld [vmem:[%s212 + $0x8] sm:$0xff]
        %v250 = vld [vmem:[#allocation5] sm:$0xff]
        %v251 = vld [vmem:[#allocation5 + $0x8] sm:$0xff]
        %v252 = vld [vmem:[#allocation5 + $0x10] sm:$0xff]
        %v253 = vld [vmem:[#allocation5 + $0x18] sm:$0xff]
        %vm254 = vcmask 261120
        %v256 = vsel %vm254, %v248, 0
        %v259 = vsel %vm254, %v249, 0
        %261 = vmatpush.msra.mxu0 0.0
        %262 = vmatpush.msra.mxu0 0.0
        %263 = vmatpush.msra.mxu0 0.0
        %264 = vmatpush.msra.mxu0 0.0
        %265 = vmatpush.msra.mxu0 0.0
        %266 = vmatpush.msra.mxu0 0.0
        %267 = vmatpush.msra.mxu0 0.0
        %268 = vmatpush.msra.mxu0 0.0
        %269 = vmatpush.msra.mxu0 0.0
        %270 = vmatpush.msra.mxu0 0.0
        %271 = vmatpush.msra.mxu0 0.0
        %272 = vmatpush.msra.mxu0 0.0
        %273 = vmatpush.msra.mxu0 %v253
        %274 = vmatpush.msra.mxu0 %v252
        %275 = vmatpush.msra.mxu0 %v251
        %276 = vmatpush.msra.mxu0 %v250
        %277 = vmatmul.f32.gmra.mxu0 %v256
        %v278 = vpop.f32.mrf.mxu0
        %v279 = vadd.f32 0.0, %v278
        %280 = vmatmul.f32.gmra.mxu0 %v259
        %v281 = vpop.f32.mrf.mxu0
        %v282 = vadd.f32 0.0, %v281
        %283 = vdwg.mxu0
        %v284 = vld [vmem:[#allocation7] sm:$0xff]
        %v285 = vld [vmem:[#allocation7 + $0x8] sm:$0xff]
        %v286 = vld [vmem:[#allocation7 + $0x10] sm:$0xff]
        %v287 = vld [vmem:[#allocation7 + $0x18] sm:$0xff]
        %v288 = vld [vmem:[#allocation7 + $0x20] sm:$0xff]
        %v289 = vld [vmem:[#allocation7 + $0x28] sm:$0xff]
        %v290 = vld [vmem:[#allocation7 + $0x30] sm:$0xff]
        %v291 = vld [vmem:[#allocation7 + $0x38] sm:$0xff]
        %v292 = vld [vmem:[#allocation7 + $0x40] sm:$0xff]
        %v293 = vld [vmem:[#allocation7 + $0x48] sm:$0xff]
        %v294 = vld [vmem:[#allocation7 + $0x50] sm:$0xff]
        %v295 = vld [vmem:[#allocation7 + $0x58] sm:$0xff]
        %v296 = vld [vmem:[#allocation7 + $0x60] sm:$0xff]
        %v297 = vld [vmem:[#allocation7 + $0x68] sm:$0xff]
        %v298 = vld [vmem:[#allocation7 + $0x70] sm:$0xff]
        %v299 = vld [vmem:[#allocation7 + $0x78] sm:$0xff]
        %300 = vmatpush.msra.mxu0 %v299
        %301 = vmatpush.msra.mxu0 %v298
        %302 = vmatpush.msra.mxu0 %v297
        %303 = vmatpush.msra.mxu0 %v296
        %304 = vmatpush.msra.mxu0 %v295
        %305 = vmatpush.msra.mxu0 %v294
        %306 = vmatpush.msra.mxu0 %v293
        %307 = vmatpush.msra.mxu0 %v292
        %308 = vmatpush.msra.mxu0 %v291
        %309 = vmatpush.msra.mxu0 %v290
        %310 = vmatpush.msra.mxu0 %v289
        %311 = vmatpush.msra.mxu0 %v288
        %312 = vmatpush.msra.mxu0 %v287
        %313 = vmatpush.msra.mxu0 %v286
        %314 = vmatpush.msra.mxu0 %v285
        %315 = vmatpush.msra.mxu0 %v284
        %316 = vmatmul.f32.gmra.mxu0 %v279
        %v317 = vpop.f32.mrf.mxu0
        %v318 = vadd.f32 0.0, %v317
        %319 = vmatmul.f32.gmra.mxu0 %v282
        %v320 = vpop.f32.mrf.mxu0
        %v321 = vadd.f32 0.0, %v320
        %322 = vdwg.mxu0
        %323 = vst [vmem:[%s245] sm:$0xff] %v318
        %324 = vst [vmem:[%s245 + $0x8] sm:$0xff] %v321
        %s325 = sand.u32 %s116, 1
        %s326 = scalar_lea.sflag [#allocation4], %s325
        %s327 = sand.u32 %s116, 1
        %s328 = smul.addr %s327, 16
        %s329 = scalar_lea.vmem [#allocation8], %s328
        // Predicated region
        $region45: #{tpu_custom_call.1} parent=31 // pred_check
          %p330 = pneg %p126
        $region46: #{tpu_custom_call.1} parent=31 // pred_check_branch
          %332 = sbr.rel (%p330) target = $region48
        $region47: #{tpu_custom_call.1} parent=31 // pred_region
          %s333 = smul.u32 2, %s26
          %335 = vsyncadd %s326, 0
          %s336 = smul.addr %s25, 4
          %s337 = sadd.s32 %s333, %s336
          %s338 = smul.addr %s337, 8
          %s339 = scalar_lea.hbm %s3, %s338
          %s340 = sshll.u32 %s329, 4
          %s341 = int_to_ptr.vmem [resolvable:$true] %s340
          %s342 = sshll.u32 %s339, 4
          %s343 = int_to_ptr.hbm [resolvable:$true] %s342
          %348 = dma.vmem_to_hbm [thread:$0]  %s341, 256, %s343, %s326, 128, 128, 8
        $region48: #{tpu_custom_call.1} parent=31 // pred_fallthru
          _
      $region32: #{tpu_custom_call.1} parent=5 // pred_fallthru
        _
      %p349 = scmp.le.s32.totalorder 2, %s16
      // Predicated region
      $region49: #{tpu_custom_call.1} parent=5 // pred_check
        %p350 = pneg %p349
      $region50: #{tpu_custom_call.1} parent=5 // pred_check_branch
        %352 = sbr.rel (%p350) target = $region52
      $region51: #{tpu_custom_call.1} parent=5 // pred_region
        %s353 = ssub.s32 %s16, 2
        // Predicated region
        $region53: #{tpu_custom_call.1} parent=51 // pred_check
          %p354 = pneg %p132
        $region54: #{tpu_custom_call.1} parent=51 // pred_check_branch
          %356 = sbr.rel (%p354) target = $region56
        $region55: #{tpu_custom_call.1} parent=51 // pred_region
          %s357 = sand.u32 %s117, 1
          %s358 = scalar_lea.sflag [#allocation4], %s357
          %s359 = sand.u32 %s117, 1
          %s360 = smul.addr %s359, 16
          %s361 = scalar_lea.vmem [#allocation8], %s360
          %363 = dma.done %s358, 256
        $region56: #{tpu_custom_call.1} parent=51 // pred_fallthru
          _
      $region52: #{tpu_custom_call.1} parent=5 // pred_fallthru
        _
    $region6: #{tpu_custom_call.1} parent=1 // loop_footer
      %s20 = sadd.s32 1, %s16
    $region7: #{tpu_custom_call.1} parent=1 // loop_footer_branch
      %15 = sbr.rel target = $region3
    $region8: #{tpu_custom_call.1} parent=1 // loop_exit
      _
    %364 = vsyncpa [#allocation3], 1
    %s365 = scalar_lea.sflag [#allocation3], 1
    %366 = vsyncpa %s365, 1
    %367 = vsyncpa [#allocation6], 1
    %368 = vsyncpa [#allocation4], 1
    %s369 = scalar_lea.sflag [#allocation4], 1
    %370 = vsyncpa %s369, 1

</llo_original>
